<compile_context>
chip_gen: v7x
topology: tpu7x:2x2x1
jax: 0.10.0
libtpu: 0.0.40
codegen_flags: <defaults>
</compile_context>

<pallas_src>
import functools

import jax
import jax.numpy as jnp
from jax.experimental import pallas as pl
from jax.experimental.pallas import tpu as pltpu

_MIB = 1024 * 1024


def _gelu_tanh(x):
    # Matches torch.nn.functional.gelu(x, approximate='tanh'); done in f32.
    c = jnp.asarray(0.7978845608028654, x.dtype)  # sqrt(2/pi)
    return 0.5 * x * (1.0 + jnp.tanh(c * (x + 0.044715 * x * x * x)))


def _device_defaults():
    """Best-effort per-generation (tile_m, vmem budget) defaults."""
    kind = ""
    try:
        kind = jax.devices()[0].device_kind.lower()
    except Exception:
        pass
    if "v6" in kind:
        # 128 MiB VMEM, ~680 flops/byte roofline -> big m tiles, big budget.
        return kind, 1024, 100 * _MIB
    if "v5" in kind:
        # 128 MiB VMEM, ~240 flops/byte roofline.
        return kind, 512, 96 * _MIB
    # v7x (64 MiB VMEM) or unknown part: stay conservative.
    return kind, 512, 44 * _MIB


def _ff_resident_kernel(x_ref, w1_ref, w2_ref, o_ref, *, compute_dtype):
    """Whole hidden dim resident in VMEM: one step per m-tile."""
    x = x_ref[...].astype(compute_dtype)
    h = _gelu_tanh(jnp.dot(x, w1_ref[...], preferred_element_type=jnp.float32))
    o_ref[...] = jnp.dot(h.astype(compute_dtype), w2_ref[...],
                         preferred_element_type=jnp.float32).astype(o_ref.dtype)


def _ff_stream_kernel(x_ref, w1_ref, w2_ref, o_ref, acc_ref, *, compute_dtype):
    """Hidden dim streamed in chunks; f32 accumulator scratch across chunks."""
    h_idx = pl.program_id(1)
    x = x_ref[...].astype(compute_dtype)
    h = _gelu_tanh(jnp.dot(x, w1_ref[...], preferred_element_type=jnp.float32))
    part = jnp.dot(h.astype(compute_dtype), w2_ref[...],
                   preferred_element_type=jnp.float32)

    @pl.when(h_idx == 0)
    def _first():  # direct write: no zero-fill, no read-modify-write
        acc_ref[...] = part

    @pl.when(h_idx != 0)
    def _rest():
        acc_ref[...] += part

    @pl.when(h_idx == pl.num_programs(1) - 1)
    def _store():
        o_ref[...] = acc_ref[...].astype(o_ref.dtype)


def prepare_weights(w_in, w_out, compute_dtype=jnp.bfloat16, pad_hidden_to=None):
    """One-time prep: torch nn.Linear (out,in) layouts -> (in,out), compute dtype.

    w_in : (H, E) input-projection weight, w_out : (E, H) output-projection
    weight.  Optionally zero-pads the hidden dim to a multiple of
    `pad_hidden_to` (padded w1 columns / w2 rows are zero, so they contribute
    nothing -> no in-kernel masking, no NaN edge-block hazard).
    """
    w1 = jnp.asarray(w_in).T.astype(compute_dtype)    # (E, H)
    w2 = jnp.asarray(w_out).T.astype(compute_dtype)   # (H, E)
    if pad_hidden_to:
        H = w1.shape[1]
        Hp = -(-H // pad_hidden_to) * pad_hidden_to
        if Hp != H:
            w1 = jnp.pad(w1, ((0, 0), (0, Hp - H)))
            w2 = jnp.pad(w2, ((0, Hp - H), (0, 0)))
    return w1, w2


def feed_forward(x, w1, w2, *, tile_m=None, tile_h=512,
                 compute_dtype=jnp.bfloat16,
                 weight_resident_bytes=None, vmem_budget_bytes=None):
    """Pallas FeedForward forward pass: gelu_tanh(x @ w1) @ w2.

    x  : (..., E) activations (output matches x.dtype; bf16 cast fused in-kernel)
    w1 : (E, H)   already-transposed input projection (see prepare_weights)
    w2 : (H, E)   already-transposed output projection
    """
    orig_shape = x.shape
    E = orig_shape[-1]
    H = w1.shape[1]
    assert w1.shape == (E, H) and w2.shape == (H, E)

    kind, default_tm, default_budget = _device_defaults()
    if tile_m is None:
        tile_m = default_tm
    if vmem_budget_bytes is None:
        vmem_budget_bytes = default_budget
    if weight_resident_bytes is None:
        weight_resident_bytes = vmem_budget_bytes // 3

    out_dtype = x.dtype
    x2 = x.reshape(-1, E)                 # no astype here: cast fused in-kernel
    M = x2.shape[0]

    if w1.dtype != compute_dtype:         # no-op if prepare_weights was used
        w1 = w1.astype(compute_dtype)
    if w2.dtype != compute_dtype:
        w2 = w2.astype(compute_dtype)

    x_bytes = jnp.dtype(x2.dtype).itemsize
    w_bytes = jnp.dtype(compute_dtype).itemsize
    o_bytes = jnp.dtype(out_dtype).itemsize

    # ---- hidden-dim tiling: weight-resident fast path when weights fit VMEM.
    weights_bytes = 2 * E * H * w_bytes
    resident = weights_bytes <= weight_resident_bytes
    if resident:
        th = H
    else:
        th = min(tile_h, H)
        if H % th:
            # Prefer a 128-aligned divisor of H; otherwise zero-pad the hidden
            # dim once (padded columns/rows are zero -> contribute nothing).
            div = next((d for d in range(th - th % 128, 0, -128) if H % d == 0),
                       None)
            if div is not None:
                th = div
            else:
                Hp = -(-H // th) * th
                w1 = jnp.pad(w1, ((0, 0), (0, Hp - H)))
                w2 = jnp.pad(w2, ((0, Hp - H), (0, 0)))
                H = Hp
    num_h = pl.cdiv(H, th)

    # ---- m tiling: big tiles move the weight-stream roofline; keep both v7x
    # TensorCores busy; shrink if the VMEM estimate exceeds the budget.
    tm = min(tile_m, M)
    if "v7" in kind and M >= 256 and pl.cdiv(M, tm) < 2:
        tm = max(128, -(-((M + 1) // 2) // 128) * 128)   # split m over 2 TCs

    def vmem_est(tm_, th_):
        est = 2 * tm_ * E * x_bytes            # x tile (double-buffered)
        est += 2 * tm_ * E * o_bytes           # out tile (double-buffered)
        est += 2 * 2 * E * th_ * w_bytes       # w1 + w2 tiles (double-buffered)
        est += tm_ * th_ * (4 + w_bytes)       # gelu f32 intermediate + bf16 copy
        if num_h > 1:
            est += tm_ * E * 4                 # f32 accumulator scratch
        return est

    while vmem_est(tm, th) > vmem_budget_bytes and tm > 128:
        tm = max(128, tm // 2)

    num_m = pl.cdiv(M, tm)

    cost = pl.CostEstimate(
        flops=4 * M * E * H,                   # two M x E x H matmuls
        transcendentals=M * H,                 # tanh in gelu
        bytes_accessed=(M * E * x_bytes + M * E * o_bytes
                        + weights_bytes * (1 if num_h == 1 else num_m)),
    )
    compiler_params = pltpu.CompilerParams(
        dimension_semantics=(("parallel",) if num_h == 1
                             else ("parallel", "arbitrary")),
        vmem_limit_bytes=min(vmem_budget_bytes + 16 * _MIB, 110 * _MIB),
    )

    if num_h == 1:
        # Weight-resident path: weights loaded once, no H re-streaming.
        out = pl.pallas_call(
            functools.partial(_ff_resident_kernel, compute_dtype=compute_dtype),
            out_shape=jax.ShapeDtypeStruct((M, E), out_dtype),
            grid_spec=pltpu.PrefetchScalarGridSpec(
                num_scalar_prefetch=0,
                grid=(num_m,),
                in_specs=[
                    pl.BlockSpec((tm, E), lambda i: (i, 0)),
                    pl.BlockSpec((E, H), lambda i: (0, 0)),   # resident
                    pl.BlockSpec((H, E), lambda i: (0, 0)),   # resident
                ],
                out_specs=pl.BlockSpec((tm, E), lambda i: (i, 0)),
            ),
            compiler_params=compiler_params,
            cost_estimate=cost,
        )(x2, w1, w2)
    else:
        # Streaming path: hidden dim chunked, f32 accumulator across chunks.
        out = pl.pallas_call(
            functools.partial(_ff_stream_kernel, compute_dtype=compute_dtype),
            out_shape=jax.ShapeDtypeStruct((M, E), out_dtype),
            grid_spec=pltpu.PrefetchScalarGridSpec(
                num_scalar_prefetch=0,
                grid=(num_m, num_h),
                in_specs=[
                    pl.BlockSpec((tm, E), lambda i, j: (i, 0)),
                    pl.BlockSpec((E, th), lambda i, j: (0, j)),
                    pl.BlockSpec((th, E), lambda i, j: (j, 0)),
                ],
                out_specs=pl.BlockSpec((tm, E), lambda i, j: (i, 0)),
                scratch_shapes=[pltpu.VMEM((tm, E), jnp.float32)],
            ),
            compiler_params=compiler_params,
            cost_estimate=cost,
        )(x2, w1, w2)

    # TODO(synk): dropout is p=0.0 in the default config -> identity, omitted.
    # TODO(synk): gated (GEGLU) branch not implemented; default config gated=False.
    # TODO(synk): for E<128 fold rows to a lane-dense (M/k, k*E) output slab.
    return out.reshape(orig_shape)


if __name__ == "__main__":
    # Default FeedForwardConfig: embed_dim=32 -> inner_dim=128, gelu(tanh),
    # gated=False, dropout=0.0.
    batch, seq, embed = 2, 8, 32
    inner = 4 * embed  # 128

    key = jax.random.PRNGKey(0)
    kx, k1, k2 = jax.random.split(key, 3)

    x = jax.random.normal(kx, (batch, seq, embed), dtype=jnp.float32)
    # torch nn.Linear weight shapes: (out_features, in_features)
    w_in = jax.random.normal(k1, (inner, embed), dtype=jnp.float32) * 0.05
    w_out = jax.random.normal(k2, (embed, inner), dtype=jnp.float32) * 0.05

    # One-time weight prep (transpose + bf16 cast) off the per-call hot path.
    w1, w2 = prepare_weights(w_in, w_out)

    y = feed_forward(x, w1, w2)
    jax.block_until_ready(y)

    # Reference with identical bf16 MXU casts and f32 accumulation.
    xb = x.reshape(-1, embed).astype(jnp.bfloat16)
    h = jnp.dot(xb, w1, preferred_element_type=jnp.float32)
    h = _gelu_tanh(h)
    ref = jnp.dot(h.astype(jnp.bfloat16), w2,
                  preferred_element_type=jnp.float32)
    ref = ref.reshape(batch, seq, embed).astype(x.dtype)

    assert y.shape == x.shape and y.dtype == x.dtype
    err = float(jnp.max(jnp.abs(y - ref)))
    assert jnp.allclose(y, ref, atol=2e-2, rtol=2e-2), f"max abs err {err}"

    print("KERNEL_OK")
</pallas_src>

<mosaic_0001>
module attributes {stable_mosaic.version = 11 : i64} {
  func.func @_ff_resident_kernel(%arg0: i32, %arg1: memref<16x32xf32, #tpu.memory_space<vmem>>, %arg2: memref<32x128xbf16, #tpu.memory_space<vmem>>, %arg3: memref<128x32xbf16, #tpu.memory_space<vmem>>, %arg4: memref<16x32xf32, #tpu.memory_space<vmem>>) attributes {dimension_semantics = [#tpu.dimension_semantics<parallel>], iteration_bounds = array<i64: 1>, scalar_prefetch = 0 : i64, scratch_operands = 0 : i64, tpu.core_type = #tpu.core_type<tc>, window_params = [{transform_indices = @transform_0, window_bounds = array<i64: 16, 32>}, {pipeline_mode = #tpu.pipeline_mode<synchronous>, transform_indices = @transform_1, window_bounds = array<i64: 32, 128>}, {pipeline_mode = #tpu.pipeline_mode<synchronous>, transform_indices = @transform_2, window_bounds = array<i64: 128, 32>}, {transform_indices = @transform_3, window_bounds = array<i64: 16, 32>}]} {
    %c0 = arith.constant 0 : index
    %c0_0 = arith.constant 0 : index
    %0 = vector.load %arg1[%c0, %c0_0] : memref<16x32xf32, #tpu.memory_space<vmem>>, vector<16x32xf32>
    %1 = arith.truncf %0 : vector<16x32xf32> to vector<16x32xbf16>
    %c0_1 = arith.constant 0 : index
    %c0_2 = arith.constant 0 : index
    %2 = vector.load %arg2[%c0_1, %c0_2] : memref<32x128xbf16, #tpu.memory_space<vmem>>, vector<32x128xbf16>
    %cst = arith.constant dense<0.000000e+00> : vector<16x128xf32>
    %3 = tpu.matmul %1, %2, %cst {dimension_numbers = #tpu.dot_dimension_numbers<[1], [0], [0], [1], [0, 0, 1, 1], [], []>} : vector<16x32xbf16>, vector<32x128xbf16>, vector<16x128xf32> -> vector<16x128xf32>
    %cst_3 = arith.constant 5.000000e-01 : f32
    %4 = vector.broadcast %cst_3 : f32 to vector<16x128xf32>
    %5 = arith.mulf %4, %3 : vector<16x128xf32>
    %cst_4 = arith.constant 4.471500e-02 : f32
    %6 = vector.broadcast %cst_4 : f32 to vector<16x128xf32>
    %7 = arith.mulf %6, %3 : vector<16x128xf32>
    %8 = arith.mulf %7, %3 : vector<16x128xf32>
    %9 = arith.mulf %8, %3 : vector<16x128xf32>
    %10 = arith.addf %3, %9 : vector<16x128xf32>
    %cst_5 = arith.constant 0.797884583 : f32
    %11 = vector.broadcast %cst_5 : f32 to vector<16x128xf32>
    %12 = arith.mulf %11, %10 : vector<16x128xf32>
    %13 = math.tanh %12 : vector<16x128xf32>
    %cst_6 = arith.constant 1.000000e+00 : f32
    %14 = vector.broadcast %cst_6 : f32 to vector<16x128xf32>
    %15 = arith.addf %14, %13 : vector<16x128xf32>
    %16 = arith.mulf %5, %15 : vector<16x128xf32>
    %17 = arith.truncf %16 : vector<16x128xf32> to vector<16x128xbf16>
    %c0_7 = arith.constant 0 : index
    %c0_8 = arith.constant 0 : index
    %18 = vector.load %arg3[%c0_7, %c0_8] : memref<128x32xbf16, #tpu.memory_space<vmem>>, vector<128x32xbf16>
    %cst_9 = arith.constant dense<0.000000e+00> : vector<16x32xf32>
    %19 = tpu.matmul %17, %18, %cst_9 {dimension_numbers = #tpu.dot_dimension_numbers<[1], [0], [0], [1], [0, 0, 1, 1], [], []>} : vector<16x128xbf16>, vector<128x32xbf16>, vector<16x32xf32> -> vector<16x32xf32>
    %c0_10 = arith.constant 0 : index
    %c0_11 = arith.constant 0 : index
    %20 = vector.load %arg4[%c0_10, %c0_11] : memref<16x32xf32, #tpu.memory_space<vmem>>, vector<16x32xf32>
    tpu.vector_store %arg4[%c0_10, %c0_11], %19 {strides = array<i32>} : memref<16x32xf32, #tpu.memory_space<vmem>>, vector<16x32xf32>,
    return
  }
  func.func @transform_0(%arg0: i32) -> (i32, i32) {
    %c0_i32 = arith.constant 0 : i32
    %c0_i32_0 = arith.constant 0 : i32
    return %arg0, %c0_i32 : i32, i32
  }
  func.func @transform_1(%arg0: i32) -> (i32, i32) {
    %c0_i32 = arith.constant 0 : i32
    %c0_i32_0 = arith.constant 0 : i32
    %c0_i32_1 = arith.constant 0 : i32
    return %c0_i32, %c0_i32_0 : i32, i32
  }
  func.func @transform_2(%arg0: i32) -> (i32, i32) {
    %c0_i32 = arith.constant 0 : i32
    %c0_i32_0 = arith.constant 0 : i32
    %c0_i32_1 = arith.constant 0 : i32
    return %c0_i32, %c0_i32_0 : i32, i32
  }
  func.func @transform_3(%arg0: i32) -> (i32, i32) {
    %c0_i32 = arith.constant 0 : i32
    %c0_i32_0 = arith.constant 0 : i32
    return %arg0, %c0_i32 : i32, i32
  }
}

</mosaic_0001>

<llo_original>
// kernel: tpu_custom_call.1
$region0: #{tpu_custom_call.1}
  #allocation0 [shape = 'u32[]', space=smem, size = 0x4, offset = 0x4, fixed_abs, tag = 'smem constant byte address 0x4 - core index']
  #allocation1 [shape = 'u32[144,128]{1,0:T(1,128)}', space=vmem, size = 0x12000, scoped, tag = 'internal scratch']
  %s0 = inlined_call_operand.vmem [shape: f32[16,32], index: 0, kind: input, shape index: {}]
  %s1 = inlined_call_operand.vmem [shape: bf16[32,128], index: 1, kind: input, shape index: {}]
  %s2 = inlined_call_operand.vmem [shape: bf16[128,32], index: 2, kind: input, shape index: {}]
  %s3 = inlined_call_operand.hbm [shape: f32[16,32], index: 3, kind: output, shape index: {}]
  %s4 = sld [smem:[#allocation0]]
  $region22: #{tpu_custom_call.1} parent=0
    _
  %s6 = ssub.s32 1, %s4
  %s7 = scalar_select 0, %s6, %s4
  $region1: #{tpu_custom_call.1} parent=0
    #allocation2 [shape = 'u8[8192]{0}', space=vmem, size = 0x2000, scoped, tag = 'output window, operand 0, single buffered']
    #allocation3 [shape = 's32[1]{0}', space=sflag, size = 0x4, scoped, tag = 'scoped memory for tpu_custom_call.1']
    %8 = vsyncpa [#allocation3], 0
    // Predicated region
    $region2: #{tpu_custom_call.1} parent=1 // pred_check
      _
    $region3: #{tpu_custom_call.1} parent=1 // pred_check_branch
      %10 = sbr.rel (0) target = $region5
    $region4: #{tpu_custom_call.1} parent=1 // pred_region
      _
    $region5: #{tpu_custom_call.1} parent=1 // pred_fallthru
      _
    // Predicated region
    $region6: #{tpu_custom_call.1} parent=1 // pred_check
      _
    $region7: #{tpu_custom_call.1} parent=1 // pred_check_branch
      %12 = sbr.rel (0) target = $region9
    $region8: #{tpu_custom_call.1} parent=1 // pred_region
      _
    $region9: #{tpu_custom_call.1} parent=1 // pred_fallthru
      _
    // Predicated region
    $region10: #{tpu_custom_call.1} parent=1 // pred_check
      _
    $region11: #{tpu_custom_call.1} parent=1 // pred_check_branch
      %14 = sbr.rel (0) target = $region13
    $region12: #{tpu_custom_call.1} parent=1 // pred_region
      _
    $region13: #{tpu_custom_call.1} parent=1 // pred_fallthru
      _
    %v16 = vld [vmem:[%s0] sm:$0xff]
    %v17 = vld [vmem:[%s0 + $0x8] sm:$0xff]
    %v18 = vpack.c.bf16 %v17, %v16
    %v19 = vld [vmem:[%s1] sm:$0xf]
    %v20 = vld [vmem:[%s1 + $0x4] sm:$0xf]
    %v21 = vld [vmem:[%s1 + $0x8] sm:$0xf]
    %v22 = vld [vmem:[%s1 + $0xc] sm:$0xf]
    %v27 = vunpack.c.l.b16 %v19
    %v28 = vunpack.c.l.b16 %v20
    %v29 = vunpack.c.l.b16 %v21
    %v30 = vunpack.c.l.b16 %v22
    %v31 = vpack.c.b16 %v28, %v27
    %v32 = vpack.c.b16 %v30, %v29
    %vm35 = vcmask 261120
    %v37 = vsel %vm35, %v18, 0
    %39 = vmatprep.subr.bf16.mxu0 0
    %40 = vmatpush1.bf16.msra.mxu0 %v31
    %41 = vmatprep.subr.bf16.mxu0 0
    %42 = vmatpush1.bf16.msra.mxu0 %v32
    %43 = vmatprep.subr.bf16.mxu0 0
    %44 = vmatpush1.bf16.msra.mxu0 0
    %45 = vmatprep.subr.bf16.mxu0 0
    %46 = vmatpush1.bf16.msra.mxu0 0
    %47 = vmatprep.subr.bf16.mxu0 0
    %48 = vmatpush1.bf16.msra.mxu0 0
    %49 = vmatprep.subr.bf16.mxu0 0
    %50 = vmatpush1.bf16.msra.mxu0 0
    %51 = vmatprep.subr.bf16.mxu0 0
    %52 = vmatpush1.bf16.msra.mxu0 0
    %53 = vmatprep.subr.bf16.mxu0 0
    %54 = vmatpush1.bf16.msra.mxu0 0
    %55 = vmatprep.subr.bf16.mxu0 0
    %56 = vmatpush1.bf16.msra.mxu0 0
    %57 = vmatprep.subr.bf16.mxu0 0
    %58 = vmatpush1.bf16.msra.mxu0 0
    %59 = vmatprep.subr.bf16.mxu0 0
    %60 = vmatpush1.bf16.msra.mxu0 0
    %61 = vmatprep.subr.bf16.mxu0 0
    %62 = vmatpush1.bf16.msra.mxu0 0
    %63 = vmatprep.subr.bf16.mxu0 0
    %64 = vmatpush1.bf16.msra.mxu0 0
    %65 = vmatprep.subr.bf16.mxu0 0
    %66 = vmatpush1.bf16.msra.mxu0 0
    %67 = vmatprep.subr.bf16.mxu0 0
    %68 = vmatpush1.bf16.msra.mxu0 0
    %69 = vmatprep.subr.bf16.mxu0 0
    %70 = vmatpush1.bf16.msra.mxu0 0
    %71 = vmatprep.mubr.bf16.mxu0 0
    %72 = vmatmul.mubr.bf16.gmra.mrb[0].mxu0 %v37
    %v73 = vpop.f32.mrb[0].mxu0
    %v74 = vadd.f32 0.0, %v73
    %v75 = vpop.f32.mrb[0].mxu0
    %v76 = vpop.f32.mrb[0].mxu0
    %v77 = vadd.f32 0.0, %v76
    %v78 = vpop.f32.mrb[0].mxu0
    %79 = vdwg.mxu0
    %v80 = vmul.f32 %v74, 0.5
    %v81 = vmul.f32 %v77, 0.5
    %v82 = vmul.f32 %v74, 0.044715
    %v83 = vmul.f32 %v77, 0.044715
    %v84 = vmul.f32 %v82, %v74
    %v85 = vmul.f32 %v83, %v77
    %v86 = vmul.f32 %v84, %v74
    %v87 = vmul.f32 %v85, %v77
    %v88 = vadd.f32 %v74, %v86
    %v89 = vadd.f32 %v77, %v87
    %v90 = vmul.f32 %v88, 0.7978846
    %v91 = vmul.f32 %v89, 0.7978846
    %v92 = vtanh.pop %v90
    %v93 = vtanh.pop %v91
    %v94 = vadd.f32 %v92, 1.0
    %v95 = vadd.f32 %v93, 1.0
    %v96 = vmul.f32 %v80, %v94
    %v97 = vmul.f32 %v81, %v95
    %v98 = vpack.c.bf16 %v97, %v96
    %v99 = vld [vmem:[%s2] sm:$0xf]
    %v100 = vld [vmem:[%s2 + $0x4] sm:$0xf]
    %v101 = vld [vmem:[%s2 + $0x8] sm:$0xf]
    %v102 = vld [vmem:[%s2 + $0xc] sm:$0xf]
    %v103 = vld [vmem:[%s2 + $0x10] sm:$0xf]
    %v104 = vld [vmem:[%s2 + $0x14] sm:$0xf]
    %v105 = vld [vmem:[%s2 + $0x18] sm:$0xf]
    %v106 = vld [vmem:[%s2 + $0x1c] sm:$0xf]
    %v107 = vld [vmem:[%s2 + $0x20] sm:$0xf]
    %v108 = vld [vmem:[%s2 + $0x24] sm:$0xf]
    %v109 = vld [vmem:[%s2 + $0x28] sm:$0xf]
    %v110 = vld [vmem:[%s2 + $0x2c] sm:$0xf]
    %v111 = vld [vmem:[%s2 + $0x30] sm:$0xf]
    %v112 = vld [vmem:[%s2 + $0x34] sm:$0xf]
    %v113 = vld [vmem:[%s2 + $0x38] sm:$0xf]
    %v114 = vld [vmem:[%s2 + $0x3c] sm:$0xf]
    %v131 = vunpack.c.l.b16 %v99
    %v132 = vunpack.c.l.b16 %v100
    %v133 = vunpack.c.l.b16 %v101
    %v134 = vunpack.c.l.b16 %v102
    %v135 = vunpack.c.l.b16 %v103
    %v136 = vunpack.c.l.b16 %v104
    %v137 = vunpack.c.l.b16 %v105
    %v138 = vunpack.c.l.b16 %v106
    %v139 = vunpack.c.l.b16 %v107
    %v140 = vunpack.c.l.b16 %v108
    %v141 = vunpack.c.l.b16 %v109
    %v142 = vunpack.c.l.b16 %v110
    %v143 = vunpack.c.l.b16 %v111
    %v144 = vunpack.c.l.b16 %v112
    %v145 = vunpack.c.l.b16 %v113
    %v146 = vunpack.c.l.b16 %v114
    %v147 = vpack.c.b16 %v132, %v131
    %v148 = vpack.c.b16 %v134, %v133
    %v149 = vpack.c.b16 %v136, %v135
    %v150 = vpack.c.b16 %v138, %v137
    %v151 = vpack.c.b16 %v140, %v139
    %v152 = vpack.c.b16 %v142, %v141
    %v153 = vpack.c.b16 %v144, %v143
    %v154 = vpack.c.b16 %v146, %v145
    %163 = vmatprep.subr.bf16.mxu0 0
    %164 = vmatpush1.bf16.msra.mxu0 %v147
    %165 = vmatprep.subr.bf16.mxu0 0
    %166 = vmatpush1.bf16.msra.mxu0 %v148
    %167 = vmatprep.subr.bf16.mxu0 0
    %168 = vmatpush1.bf16.msra.mxu0 %v149
    %169 = vmatprep.subr.bf16.mxu0 0
    %170 = vmatpush1.bf16.msra.mxu0 %v150
    %171 = vmatprep.subr.bf16.mxu0 0
    %172 = vmatpush1.bf16.msra.mxu0 %v151
    %173 = vmatprep.subr.bf16.mxu0 0
    %174 = vmatpush1.bf16.msra.mxu0 %v152
    %175 = vmatprep.subr.bf16.mxu0 0
    %176 = vmatpush1.bf16.msra.mxu0 %v153
    %177 = vmatprep.subr.bf16.mxu0 0
    %178 = vmatpush1.bf16.msra.mxu0 %v154
    %179 = vmatprep.subr.bf16.mxu0 0
    %180 = vmatpush1.bf16.msra.mxu0 0
    %181 = vmatprep.subr.bf16.mxu0 0
    %182 = vmatpush1.bf16.msra.mxu0 0
    %183 = vmatprep.subr.bf16.mxu0 0
    %184 = vmatpush1.bf16.msra.mxu0 0
    %185 = vmatprep.subr.bf16.mxu0 0
    %186 = vmatpush1.bf16.msra.mxu0 0
    %187 = vmatprep.subr.bf16.mxu0 0
    %188 = vmatpush1.bf16.msra.mxu0 0
    %189 = vmatprep.subr.bf16.mxu0 0
    %190 = vmatpush1.bf16.msra.mxu0 0
    %191 = vmatprep.subr.bf16.mxu0 0
    %192 = vmatpush1.bf16.msra.mxu0 0
    %193 = vmatprep.subr.bf16.mxu0 0
    %194 = vmatpush1.bf16.msra.mxu0 0
    %195 = vmatprep.mubr.bf16.mxu0 0
    %196 = vmatmul.mubr.bf16.gmra.mrb[0].mxu0 %v98
    %v197 = vpop.f32.mrb[0].mxu0
    %v198 = vadd.f32 0.0, %v197
    %v199 = vpop.f32.mrb[0].mxu0
    %v200 = vpop.f32.mrb[0].mxu0
    %v201 = vadd.f32 0.0, %v200
    %v202 = vpop.f32.mrb[0].mxu0
    %203 = vdwg.mxu0
    %204 = vst.msk [vmem:[#allocation2] sm:$0xff] %vm35, %v198
    %205 = vst.msk [vmem:[#allocation2 + $0x8] sm:$0xff] %vm35, %v201
    // Predicated region
    $region14: #{tpu_custom_call.1} parent=1 // pred_check
      _
    $region15: #{tpu_custom_call.1} parent=1 // pred_check_branch
      %207 = sbr.rel (0) target = $region17
    $region16: #{tpu_custom_call.1} parent=1 // pred_region
      %s209 = ssub.s32 256, 256
      %210 = vsyncadd [#allocation3], %s209
      %s211 = sshll.u32 [#allocation2], 4
      %s212 = int_to_ptr.vmem [resolvable:$true] %s211
      %217 = dma.vmem_to_hbm [thread:$0]  %s212, 256, %s3, [#allocation3], 128, 128, 8
    $region17: #{tpu_custom_call.1} parent=1 // pred_fallthru
      _
    // Predicated region
    $region18: #{tpu_custom_call.1} parent=1 // pred_check
      _
    $region19: #{tpu_custom_call.1} parent=1 // pred_check_branch
      %219 = sbr.rel (0) target = $region21
    $region20: #{tpu_custom_call.1} parent=1 // pred_region
      %220 = dma.done [#allocation3], 256
    $region21: #{tpu_custom_call.1} parent=1 // pred_fallthru
      _
    %221 = vsyncpa [#allocation3], 1

</llo_original>
